<compile_context>
chip_gen: v5e
topology: v5e:2x2
jax: 0.10.0
libtpu: 0.0.40
codegen_flags: <defaults>
</compile_context>

<pallas_src>
from functools import partial

import jax
import jax.numpy as jnp
from jax.experimental import pallas as pl
from jax.experimental.pallas import tpu as pltpu


# ------------------------------ gate helper ---------------------------------
def _excite(pooled, w1t, b1, w2, b2):
    """pooled: (Bb, C, 1) f32 per-channel means -> (Bb, C) f32 gate in [0, 1].

    Kept as broadcast-multiply + XLU reductions (NOT jnp.dot): the contraction
    is tiny, would underfill the MXU, and is free filler off the DMA path.
    """
    h = jnp.sum(pooled * w1t[None, :, :], axis=1) + b1            # (Bb, Cr)
    h = jnp.maximum(h, 0.0)                                       # ReLU
    s = jnp.sum(h[:, None, :] * w2[None, :, :], axis=-1) + b2     # (Bb, C)
    return jnp.clip(s + 3.0, 0.0, 6.0) * (1.0 / 6.0)              # h_sigmoid


# ----------------------- fused single-pass kernel ---------------------------
def _se_fused_kernel(x_ref, w1t_ref, b1_ref, w2_ref, b2_ref, out_ref, *, inv_hw):
    """x_ref/out_ref: (Bb, C, HW) native dtype. Weights are small f32 blocks."""
    x = x_ref[...]
    xf = x.astype(jnp.float32)                                    # f32 accumulation
    pooled = jnp.sum(xf, axis=-1, keepdims=True) * inv_hw         # (Bb, C, 1)
    s = _excite(pooled, w1t_ref[...], b1_ref[...], w2_ref[...], b2_ref[...])
    out_ref[...] = (xf * s[:, :, None]).astype(out_ref.dtype)


# -------------------- two-pass kernels (large H*W plan) ---------------------
def _se_pool_gate_kernel(x_ref, w1t_ref, b1_ref, w2_ref, b2_ref, gate_ref,
                         acc_ref, *, inv_hw, thw, hw_valid, need_mask):
    """Pass 1: f32 pool accumulation over the H*W grid axis, gate on last step."""
    hw = pl.program_id(1)

    @pl.when(hw == 0)
    def _():
        acc_ref[...] = jnp.zeros_like(acc_ref)

    xf = x_ref[...].astype(jnp.float32)                           # (1, C, Thw)
    if need_mask:  # static flag: ragged last H*W chunk -> zero the OOB lanes
        col = jax.lax.broadcasted_iota(jnp.int32, xf.shape, 2) + hw * thw
        xf = jnp.where(col < hw_valid, xf, 0.0)
    acc_ref[...] += jnp.sum(xf, axis=-1, keepdims=True)           # (1, C, 1) f32

    @pl.when(hw == pl.num_programs(1) - 1)
    def _():
        pooled = acc_ref[...] * inv_hw
        s = _excite(pooled, w1t_ref[...], b1_ref[...], w2_ref[...], b2_ref[...])
        gate_ref[...] = s[:, :, None]


def _se_scale_kernel(gate_ref, x_ref, out_ref):
    """Pass 2: re-read x and apply the per-(n, c) gate."""
    out_ref[...] = (x_ref[...].astype(jnp.float32) * gate_ref[...]).astype(out_ref.dtype)


# ------------------------------ sizing helpers -------------------------------
def _vmem_capacity_bytes():
    try:
        info = pltpu.get_tpu_info()
        cap = getattr(info, "vmem_capacity_bytes", None)
        if cap:
            return int(cap)
    except Exception:
        pass
    return 64 * 1024 * 1024  # conservative default: v7x is 64 MiB per TensorCore


def _choose_thw(C, HW, itemsize, budget):
    """H*W chunk for the two-pass path: multiple of 128 that fits the budget."""
    per_lane = C * (4 * itemsize + 4)          # 2 in + 2 out buffers + f32 temp
    thw = max(128, (budget // per_lane) // 128 * 128)
    hw_cap = max(128, (HW // 128) * 128)
    return int(min(thw, hw_cap))


def _weight_specs(C, Cr, index_map):
    return [
        pl.BlockSpec((C, Cr), index_map),   # w1^T
        pl.BlockSpec((1, Cr), index_map),   # b1
        pl.BlockSpec((C, Cr), index_map),   # w2
        pl.BlockSpec((1, C), index_map),    # b2
    ]
    # note: at MobileNet-scale C these constant blocks could also be
    # single-buffered (pl.Buffered(1)) / bf16 for extra v7x VMEM headroom.


# --------------------------------- wrapper ----------------------------------
def se_layer_forward(x_nchw, w1, b1, w2, b2, *, vmem_budget_bytes=None,
                     donate_x=False):
    """SELayer forward.

    x: (N, C, H, W) any float dtype (bf16 recommended); w1: (Cr, C); b1: (Cr,);
    w2: (C, Cr); b2: (C,).  Output has x's dtype; internal accumulation is f32.
    """
    N, C, H, W = x_nchw.shape
    Cr = w1.shape[0]
    HW = H * W
    dtype = x_nchw.dtype
    itemsize = jnp.dtype(dtype).itemsize

    # Contiguous reshape only: lanes = H*W, sublanes = C (no transpose, no
    # relayout round trip, no dtype widening of the big tensor).
    x3 = x_nchw.reshape(N, C, HW)

    # Tiny parameters: keep f32 for accumulation precision (a few KiB at most).
    w1t = jnp.transpose(w1).astype(jnp.float32)     # (C, Cr)
    b1r = b1.reshape(1, Cr).astype(jnp.float32)     # (1, Cr)
    w2r = w2.astype(jnp.float32)                    # (C, Cr)
    b2r = b2.reshape(1, C).astype(jnp.float32)      # (1, C)
    weight_bytes = 4 * (2 * C * Cr + Cr + C)

    cap = _vmem_capacity_bytes() if vmem_budget_bytes is None else int(vmem_budget_bytes)
    budget = int(cap * 0.6)                          # headroom for compiler scratch
    vmem_limit = max(int(cap * 0.75), 16 * 1024 * 1024)
    inv_hw = 1.0 / float(HW)

    # Per-sample VMEM cost of the fused path: double-buffered in + out blocks
    # plus one f32 temporary for the upcast product.
    per_sample = C * HW * (2 * itemsize + 2 * itemsize + 4)

    if per_sample + weight_bytes <= budget:
        # ---------------- fused single pass: (Bb, C, HW) blocks --------------
        bb_fit = max(1, (budget - weight_bytes) // per_sample)
        bb_cap = max(1, (N + 1) // 2) if N >= 2 else 1   # >=2 steps -> both v7x TCs
        Bb = int(min(N, bb_fit, bb_cap))
        grid = (int(pl.cdiv(N, Bb)),)

        out3 = pl.pallas_call(
            partial(_se_fused_kernel, inv_hw=inv_hw),
            out_shape=jax.ShapeDtypeStruct((N, C, HW), dtype),
            grid_spec=pltpu.PrefetchScalarGridSpec(
                num_scalar_prefetch=0,
                grid=grid,
                in_specs=[pl.BlockSpec((Bb, C, HW), lambda i: (i, 0, 0))]
                         + _weight_specs(C, Cr, lambda i: (0, 0)),
                out_specs=pl.BlockSpec((Bb, C, HW), lambda i: (i, 0, 0)),
            ),
            compiler_params=pltpu.CompilerParams(
                dimension_semantics=("parallel",),
                vmem_limit_bytes=vmem_limit,
            ),
            input_output_aliases=({0: 0} if donate_x else {}),
        )(x3, w1t, b1r, w2r, b2r)
        return out3.reshape(N, C, H, W)

    # ------------- two-pass plan for H*W slabs that exceed VMEM --------------
    thw = _choose_thw(C, HW, itemsize, budget)
    n_hw = int(pl.cdiv(HW, thw))
    need_mask = (HW % thw) != 0

    gate = pl.pallas_call(
        partial(_se_pool_gate_kernel, inv_hw=inv_hw, thw=thw,
                hw_valid=HW, need_mask=need_mask),
        out_shape=jax.ShapeDtypeStruct((N, C, 1), jnp.float32),
        grid_spec=pltpu.PrefetchScalarGridSpec(
            num_scalar_prefetch=0,
            grid=(N, n_hw),
            in_specs=[pl.BlockSpec((1, C, thw), lambda i, j: (i, 0, j))]
                     + _weight_specs(C, Cr, lambda i, j: (0, 0)),
            out_specs=pl.BlockSpec((1, C, 1), lambda i, j: (i, 0, 0)),
            scratch_shapes=[pltpu.VMEM((1, C, 1), jnp.float32)],
        ),
        compiler_params=pltpu.CompilerParams(
            dimension_semantics=("parallel", "arbitrary"),
            vmem_limit_bytes=vmem_limit,
        ),
    )(x3, w1t, b1r, w2r, b2r)

    out3 = pl.pallas_call(
        _se_scale_kernel,
        out_shape=jax.ShapeDtypeStruct((N, C, HW), dtype),
        grid_spec=pltpu.PrefetchScalarGridSpec(
            num_scalar_prefetch=0,
            grid=(N, n_hw),
            in_specs=[pl.BlockSpec((1, C, 1), lambda i, j: (i, 0, 0)),
                      pl.BlockSpec((1, C, thw), lambda i, j: (i, 0, j))],
            out_specs=pl.BlockSpec((1, C, thw), lambda i, j: (i, 0, j)),
        ),
        compiler_params=pltpu.CompilerParams(
            dimension_semantics=("parallel", "parallel"),
            vmem_limit_bytes=vmem_limit,
        ),
        input_output_aliases=({1: 0} if donate_x else {}),
    )(gate, x3)
    return out3.reshape(N, C, H, W)


# ---------------------------- pure-JAX reference -----------------------------
def ref_forward(x, w1, b1, w2, b2):
    y = jnp.mean(x, axis=(2, 3))                         # (N, C)
    y = jnp.maximum(y @ w1.T + b1, 0.0)                  # (N, Cr)
    y = y @ w2.T + b2                                    # (N, C)
    y = jnp.clip(y + 3.0, 0.0, 6.0) / 6.0                # h_sigmoid
    return x * y[:, :, None, None]


# ----------------------------------- main ------------------------------------
if __name__ == "__main__":
    key = jax.random.PRNGKey(0)
    N, C, H, W = 2, 16, 16, 16
    reduction = 4
    Cr = C // reduction
    ks = jax.random.split(key, 5)

    x_f32 = jax.random.normal(ks[0], (N, C, H, W), jnp.float32)
    # PyTorch Linear layouts: weight (out_features, in_features), bias (out,)
    w1 = 0.3 * jax.random.normal(ks[1], (Cr, C), jnp.float32)
    b1 = 0.1 * jax.random.normal(ks[2], (Cr,), jnp.float32)
    w2 = 0.3 * jax.random.normal(ks[3], (C, Cr), jnp.float32)
    b2 = 0.1 * jax.random.normal(ks[4], (C,), jnp.float32)

    # 1) f32 I/O, fused single-pass path.
    out = jax.block_until_ready(se_layer_forward(x_f32, w1, b1, w2, b2))
    ref = ref_forward(x_f32, w1, b1, w2, b2)
    assert out.shape == (N, C, H, W) and out.dtype == jnp.float32
    err = float(jnp.max(jnp.abs(out - ref)))
    assert err < 1e-4, f"f32 fused path: max abs err {err}"

    # 2) bf16 I/O (native model dtype; half the HBM traffic), fused path.
    x_bf16 = x_f32.astype(jnp.bfloat16)
    out_bf = jax.block_until_ready(se_layer_forward(x_bf16, w1, b1, w2, b2))
    ref_bf = ref_forward(x_bf16.astype(jnp.float32), w1, b1, w2, b2)
    assert out_bf.dtype == jnp.bfloat16
    err_bf = float(jnp.max(jnp.abs(out_bf.astype(jnp.float32) - ref_bf)))
    assert err_bf < 5e-2, f"bf16 fused path: max abs err {err_bf}"

    # 3) Two-pass (large-H*W) path, forced by a tiny VMEM budget.
    out_tp = jax.block_until_ready(
        se_layer_forward(x_bf16, w1, b1, w2, b2, vmem_budget_bytes=64 * 1024))
    err_tp = float(jnp.max(jnp.abs(out_tp.astype(jnp.float32) - ref_bf)))
    assert err_tp < 5e-2, f"two-pass path: max abs err {err_tp}"

    print("KERNEL_OK")
</pallas_src>

<mosaic_0001>
module attributes {stable_mosaic.version = 11 : i64} {
  func.func @_se_fused_kernel(%arg0: i32, %arg1: memref<1x16x256xf32, #tpu.memory_space<vmem>>, %arg2: memref<16x4xf32, #tpu.memory_space<vmem>>, %arg3: memref<1x4xf32, #tpu.memory_space<vmem>>, %arg4: memref<16x4xf32, #tpu.memory_space<vmem>>, %arg5: memref<1x16xf32, #tpu.memory_space<vmem>>, %arg6: memref<1x16x256xf32, #tpu.memory_space<vmem>>) attributes {dimension_semantics = [#tpu.dimension_semantics<parallel>], iteration_bounds = array<i64: 2>, scalar_prefetch = 0 : i64, scratch_operands = 0 : i64, tpu.core_type = #tpu.core_type<tc>, window_params = [{transform_indices = @transform_0, window_bounds = array<i64: 1, 16, 256>}, {pipeline_mode = #tpu.pipeline_mode<synchronous>, transform_indices = @transform_1, window_bounds = array<i64: 16, 4>}, {pipeline_mode = #tpu.pipeline_mode<synchronous>, transform_indices = @transform_2, window_bounds = array<i64: 1, 4>}, {pipeline_mode = #tpu.pipeline_mode<synchronous>, transform_indices = @transform_3, window_bounds = array<i64: 16, 4>}, {pipeline_mode = #tpu.pipeline_mode<synchronous>, transform_indices = @transform_4, window_bounds = array<i64: 1, 16>}, {transform_indices = @transform_5, window_bounds = array<i64: 1, 16, 256>}]} {
    %c0 = arith.constant 0 : index
    %c0_0 = arith.constant 0 : index
    %c0_1 = arith.constant 0 : index
    %0 = vector.load %arg1[%c0, %c0_0, %c0_1] : memref<1x16x256xf32, #tpu.memory_space<vmem>>, vector<1x16x256xf32>
    %cst = arith.constant dense<0.000000e+00> : vector<1x16xf32>
    %1 = vector.multi_reduction <add>, %0, %cst [2] : vector<1x16x256xf32> to vector<1x16xf32>
    %2 = vector.shape_cast %1 : vector<1x16xf32> to vector<1x16x1xf32>
    %cst_2 = arith.constant 3.906250e-03 : f32
    %3 = vector.broadcast %cst_2 : f32 to vector<1x16x1xf32>
    %4 = arith.mulf %2, %3 : vector<1x16x1xf32>
    %c0_3 = arith.constant 0 : index
    %c0_4 = arith.constant 0 : index
    %5 = vector.load %arg2[%c0_3, %c0_4] : memref<16x4xf32, #tpu.memory_space<vmem>>, vector<16x4xf32>
    %c0_5 = arith.constant 0 : index
    %c0_6 = arith.constant 0 : index
    %6 = vector.load %arg3[%c0_5, %c0_6] : memref<1x4xf32, #tpu.memory_space<vmem>>, vector<1x4xf32>
    %c0_7 = arith.constant 0 : index
    %c0_8 = arith.constant 0 : index
    %7 = vector.load %arg4[%c0_7, %c0_8] : memref<16x4xf32, #tpu.memory_space<vmem>>, vector<16x4xf32>
    %c0_9 = arith.constant 0 : index
    %c0_10 = arith.constant 0 : index
    %8 = vector.load %arg5[%c0_9, %c0_10] : memref<1x16xf32, #tpu.memory_space<vmem>>, vector<1x16xf32>
    %9 = vector.shape_cast %5 : vector<16x4xf32> to vector<1x16x4xf32>
    %10 = vector.broadcast %4 : vector<1x16x1xf32> to vector<1x16x4xf32>
    %11 = arith.mulf %10, %9 : vector<1x16x4xf32>
    %cst_11 = arith.constant dense<0.000000e+00> : vector<1x4xf32>
    %12 = vector.multi_reduction <add>, %11, %cst_11 [1] : vector<1x16x4xf32> to vector<1x4xf32>
    %13 = arith.addf %12, %6 : vector<1x4xf32>
    %cst_12 = arith.constant 0.000000e+00 : f32
    %14 = vector.broadcast %cst_12 : f32 to vector<1x4xf32>
    %15 = arith.maximumf %13, %14 : vector<1x4xf32>
    %16 = vector.shape_cast %15 : vector<1x4xf32> to vector<1x1x4xf32>
    %17 = vector.shape_cast %7 : vector<16x4xf32> to vector<1x16x4xf32>
    %18 = vector.broadcast %16 : vector<1x1x4xf32> to vector<1x16x4xf32>
    %19 = arith.mulf %18, %17 : vector<1x16x4xf32>
    %cst_13 = arith.constant dense<0.000000e+00> : vector<1x16xf32>
    %20 = vector.multi_reduction <add>, %19, %cst_13 [2] : vector<1x16x4xf32> to vector<1x16xf32>
    %21 = arith.addf %20, %8 : vector<1x16xf32>
    %cst_14 = arith.constant 3.000000e+00 : f32
    %22 = vector.broadcast %cst_14 : f32 to vector<1x16xf32>
    %23 = arith.addf %21, %22 : vector<1x16xf32>
    %cst_15 = arith.constant 0.000000e+00 : f32
    %cst_16 = arith.constant 6.000000e+00 : f32
    %24 = vector.broadcast %cst_15 : f32 to vector<1x16xf32>
    %25 = arith.maximumf %24, %23 : vector<1x16xf32>
    %26 = vector.broadcast %cst_16 : f32 to vector<1x16xf32>
    %27 = arith.minimumf %26, %25 : vector<1x16xf32>
    %cst_17 = arith.constant 0.166666672 : f32
    %28 = vector.broadcast %cst_17 : f32 to vector<1x16xf32>
    %29 = arith.mulf %27, %28 : vector<1x16xf32>
    %30 = vector.shape_cast %29 : vector<1x16xf32> to vector<1x16x1xf32>
    %31 = vector.broadcast %30 : vector<1x16x1xf32> to vector<1x16x256xf32>
    %32 = arith.mulf %0, %31 : vector<1x16x256xf32>
    %c0_18 = arith.constant 0 : index
    %c0_19 = arith.constant 0 : index
    %c0_20 = arith.constant 0 : index
    %33 = vector.load %arg6[%c0_18, %c0_19, %c0_20] : memref<1x16x256xf32, #tpu.memory_space<vmem>>, vector<1x16x256xf32>
    tpu.vector_store %arg6[%c0_18, %c0_19, %c0_20], %32 {strides = array<i32>} : memref<1x16x256xf32, #tpu.memory_space<vmem>>, vector<1x16x256xf32>,
    return
  }
  func.func @transform_0(%arg0: i32) -> (i32, i32, i32) {
    %c0_i32 = arith.constant 0 : i32
    %c0_i32_0 = arith.constant 0 : i32
    %c0_i32_1 = arith.constant 0 : i32
    return %arg0, %c0_i32, %c0_i32_0 : i32, i32, i32
  }
  func.func @transform_1(%arg0: i32) -> (i32, i32) {
    %c0_i32 = arith.constant 0 : i32
    %c0_i32_0 = arith.constant 0 : i32
    %c0_i32_1 = arith.constant 0 : i32
    return %c0_i32, %c0_i32_0 : i32, i32
  }
  func.func @transform_2(%arg0: i32) -> (i32, i32) {
    %c0_i32 = arith.constant 0 : i32
    %c0_i32_0 = arith.constant 0 : i32
    %c0_i32_1 = arith.constant 0 : i32
    return %c0_i32, %c0_i32_0 : i32, i32
  }
  func.func @transform_3(%arg0: i32) -> (i32, i32) {
    %c0_i32 = arith.constant 0 : i32
    %c0_i32_0 = arith.constant 0 : i32
    %c0_i32_1 = arith.constant 0 : i32
    return %c0_i32, %c0_i32_0 : i32, i32
  }
  func.func @transform_4(%arg0: i32) -> (i32, i32) {
    %c0_i32 = arith.constant 0 : i32
    %c0_i32_0 = arith.constant 0 : i32
    %c0_i32_1 = arith.constant 0 : i32
    return %c0_i32, %c0_i32_0 : i32, i32
  }
  func.func @transform_5(%arg0: i32) -> (i32, i32, i32) {
    %c0_i32 = arith.constant 0 : i32
    %c0_i32_0 = arith.constant 0 : i32
    %c0_i32_1 = arith.constant 0 : i32
    return %arg0, %c0_i32, %c0_i32_0 : i32, i32, i32
  }
}

</mosaic_0001>

<llo_original>
// kernel: tpu_custom_call.1
$region0: #{tpu_custom_call.1}
  #allocation0 [shape = 'u32[]', space=smem, size = 0x4, offset = 0x4, fixed_abs, tag = 'smem constant byte address 0x4 - core index']
  #allocation1 [shape = 'u32[72,128]{1,0:T(1,128)}', space=vmem, size = 0x9000, scoped, tag = 'internal scratch']
  %s0 = inlined_call_operand.hbm [shape: f32[2,16,256], index: 0, kind: input, shape index: {}]
  %s1 = inlined_call_operand.vmem [shape: f32[16,4], index: 1, kind: input, shape index: {}]
  %s2 = inlined_call_operand.vmem [shape: f32[1,4], index: 2, kind: input, shape index: {}]
  %s3 = inlined_call_operand.vmem [shape: f32[16,4], index: 3, kind: input, shape index: {}]
  %s4 = inlined_call_operand.vmem [shape: f32[1,16], index: 4, kind: input, shape index: {}]
  %s5 = inlined_call_operand.hbm [shape: f32[2,16,256], index: 5, kind: output, shape index: {}]
  %s6 = sld [smem:[#allocation0]]
  $region57: #{tpu_custom_call.1} parent=0
    _
  %s8 = ssub.s32 1, %s6
  %s9 = scalar_select 0, %s8, %s6
  $region1: #{tpu_custom_call.1} parent=0
    #allocation2 [shape = 'u8[32768]{0}', space=vmem, size = 0x8000, scoped, tag = 'input window, operand 0']
    #allocation3 [shape = 's32[2]{0}', space=sflag, size = 0x8, scoped, tag = 'scoped memory for tpu_custom_call.1']
    #allocation4 [shape = 's32[2]{0}', space=sflag, size = 0x8, scoped, tag = 'scoped memory for tpu_custom_call.1']
    #allocation5 [shape = 'u8[32768]{0}', space=vmem, size = 0x8000, scoped, tag = 'output window, operand 0']
    %10 = vsyncpa [#allocation3], 0
    %s11 = scalar_lea.sflag [#allocation3], 1
    %12 = vsyncpa %s11, 0
    %13 = vsyncpa [#allocation4], 0
    %s14 = scalar_lea.sflag [#allocation4], 1
    %15 = vsyncpa %s14, 0
    loop: start=0, step=1, limit=4
    $region2: #{tpu_custom_call.1} parent=1 // loop_pre_header
      _
    $region3: #{tpu_custom_call.1} parent=1 // loop_header
      %s17 = sphi 0, %s21
      %p18 = scmp.ge.s32.totalorder %s17, 4
      %s27 = sphi 0, %s29
      %s30 = sphi 0, %s27
      %s31 = sphi 0, %s30
      %s47 = sphi 0, %s31
      %s51 = sphi 0, %s51
      %s53 = sphi 0, %s51
      %s54 = sphi 0, %s53
      %s68 = sphi 0, %s54
      %s72 = sphi 0, %s72
      %s74 = sphi 0, %s72
      %s75 = sphi 0, %s74
      %s89 = sphi 0, %s75
      %s93 = sphi 0, %s93
      %s95 = sphi 0, %s93
      %s96 = sphi 0, %s95
      %s110 = sphi 0, %s96
      %s114 = sphi 0, %s114
      %s116 = sphi 0, %s114
      %s117 = sphi 0, %s116
      %s131 = sphi 0, %s117
      %s137 = sphi 0, %s139
      %s140 = sphi 0, %s137
      %s141 = sphi 0, %s140
      %s157 = sphi 0, %s141
    $region4: #{tpu_custom_call.1} parent=1 // loop_header_branch
      %20 = sbr.rel (%p18) target = $region8
    $region5: #{tpu_custom_call.1} parent=1 // loop_body
      %s22 = ssub.s32 %s17, 1
      %s23 = ssub.s32 %s17, 2
      %s24 = sadd.s32 %s17, 1
      %s25 = ssub.s32 %s17, %s24
      %p26 = scmp.eq.s32.totalorder %s25, 0
      %s28 = sadd.s32 %s27, 1
      %s29 = scalar_select %p26, %s27, %s28
      %p32 = pneg %p26
      %p33 = scmp.eq.s32.totalorder %s17, 1
      %p34 = por %p32, %p33
      %p35 = scmp.ne.s32.totalorder %s27, %s30
      %p36 = scmp.eq.s32.totalorder %s17, 0
      %p37 = por %p35, %p36
      %p38 = scmp.ne.s32.totalorder %s27, %s30
      %p39 = scmp.eq.s32.totalorder %s22, 1
      %p40 = por %p38, %p39
      %p41 = scmp.ne.s32.totalorder %s30, %s31
      %p42 = scmp.eq.s32.totalorder %s22, 0
      %p43 = por %p41, %p42
      %p44 = scmp.ne.s32.totalorder %s30, %s31
      %p45 = scmp.eq.s32.totalorder %s23, 1
      %p46 = por %p44, %p45
      %p48 = scmp.ne.s32.totalorder %s31, %s47
      %p49 = scmp.eq.s32.totalorder %s23, 0
      %p50 = por %p48, %p49
      %s52 = sadd.s32 %s51, 1
      %p55 = scmp.eq.s32.totalorder %s17, 1
      %p56 = scmp.ne.s32.totalorder %s51, %s53
      %p57 = scmp.eq.s32.totalorder %s17, 0
      %p58 = por %p56, %p57
      %p59 = scmp.ne.s32.totalorder %s51, %s53
      %p60 = scmp.eq.s32.totalorder %s22, 1
      %p61 = por %p59, %p60
      %p62 = scmp.ne.s32.totalorder %s53, %s54
      %p63 = scmp.eq.s32.totalorder %s22, 0
      %p64 = por %p62, %p63
      %p65 = scmp.ne.s32.totalorder %s53, %s54
      %p66 = scmp.eq.s32.totalorder %s23, 1
      %p67 = por %p65, %p66
      %p69 = scmp.ne.s32.totalorder %s54, %s68
      %p70 = scmp.eq.s32.totalorder %s23, 0
      %p71 = por %p69, %p70
      %s73 = sadd.s32 %s72, 1
      %p76 = scmp.eq.s32.totalorder %s17, 1
      %p77 = scmp.ne.s32.totalorder %s72, %s74
      %p78 = scmp.eq.s32.totalorder %s17, 0
      %p79 = por %p77, %p78
      %p80 = scmp.ne.s32.totalorder %s72, %s74
      %p81 = scmp.eq.s32.totalorder %s22, 1
      %p82 = por %p80, %p81
      %p83 = scmp.ne.s32.totalorder %s74, %s75
      %p84 = scmp.eq.s32.totalorder %s22, 0
      %p85 = por %p83, %p84
      %p86 = scmp.ne.s32.totalorder %s74, %s75
      %p87 = scmp.eq.s32.totalorder %s23, 1
      %p88 = por %p86, %p87
      %p90 = scmp.ne.s32.totalorder %s75, %s89
      %p91 = scmp.eq.s32.totalorder %s23, 0
      %p92 = por %p90, %p91
      %s94 = sadd.s32 %s93, 1
      %p97 = scmp.eq.s32.totalorder %s17, 1
      %p98 = scmp.ne.s32.totalorder %s93, %s95
      %p99 = scmp.eq.s32.totalorder %s17, 0
      %p100 = por %p98, %p99
      %p101 = scmp.ne.s32.totalorder %s93, %s95
      %p102 = scmp.eq.s32.totalorder %s22, 1
      %p103 = por %p101, %p102
      %p104 = scmp.ne.s32.totalorder %s95, %s96
      %p105 = scmp.eq.s32.totalorder %s22, 0
      %p106 = por %p104, %p105
      %p107 = scmp.ne.s32.totalorder %s95, %s96
      %p108 = scmp.eq.s32.totalorder %s23, 1
      %p109 = por %p107, %p108
      %p111 = scmp.ne.s32.totalorder %s96, %s110
      %p112 = scmp.eq.s32.totalorder %s23, 0
      %p113 = por %p111, %p112
      %s115 = sadd.s32 %s114, 1
      %p118 = scmp.eq.s32.totalorder %s17, 1
      %p119 = scmp.ne.s32.totalorder %s114, %s116
      %p120 = scmp.eq.s32.totalorder %s17, 0
      %p121 = por %p119, %p120
      %p122 = scmp.ne.s32.totalorder %s114, %s116
      %p123 = scmp.eq.s32.totalorder %s22, 1
      %p124 = por %p122, %p123
      %p125 = scmp.ne.s32.totalorder %s116, %s117
      %p126 = scmp.eq.s32.totalorder %s22, 0
      %p127 = por %p125, %p126
      %p128 = scmp.ne.s32.totalorder %s116, %s117
      %p129 = scmp.eq.s32.totalorder %s23, 1
      %p130 = por %p128, %p129
      %p132 = scmp.ne.s32.totalorder %s117, %s131
      %p133 = scmp.eq.s32.totalorder %s23, 0
      %p134 = por %p132, %p133
      %s135 = ssub.s32 %s17, %s24
      %p136 = scmp.eq.s32.totalorder %s135, 0
      %s138 = sadd.s32 %s137, 1
      %s139 = scalar_select %p136, %s137, %s138
      %p142 = pneg %p136
      %p143 = scmp.eq.s32.totalorder %s17, 1
      %p144 = por %p142, %p143
      %p145 = scmp.ne.s32.totalorder %s137, %s140
      %p146 = scmp.eq.s32.totalorder %s17, 0
      %p147 = por %p145, %p146
      %p148 = scmp.ne.s32.totalorder %s137, %s140
      %p149 = scmp.eq.s32.totalorder %s22, 1
      %p150 = por %p148, %p149
      %p151 = scmp.ne.s32.totalorder %s140, %s141
      %p152 = scmp.eq.s32.totalorder %s22, 0
      %p153 = por %p151, %p152
      %p154 = scmp.ne.s32.totalorder %s140, %s141
      %p155 = scmp.eq.s32.totalorder %s23, 1
      %p156 = por %p154, %p155
      %p158 = scmp.ne.s32.totalorder %s141, %s157
      %p159 = scmp.eq.s32.totalorder %s23, 0
      %p160 = por %p158, %p159
      %p161 = scmp.le.s32.totalorder 1, %s17
      %p162 = scmp.lt.s32.totalorder %s17, 3
      %p163 = pnand %p161, %p162
      %p164 = pneg %p163
      // Predicated region
      $region9: #{tpu_custom_call.1} parent=5 // pred_check
        _
      $region10: #{tpu_custom_call.1} parent=5 // pred_check_branch
        %166 = sbr.rel (%p163) target = $region12
      $region11: #{tpu_custom_call.1} parent=5 // pred_region
        %s167 = ssub.s32 %s17, 1
        // Predicated region
        $region13: #{tpu_custom_call.1} parent=11 // pred_check
          %p168 = pneg %p64
        $region14: #{tpu_custom_call.1} parent=11 // pred_check_branch
          %170 = sbr.rel (%p168) target = $region16
        $region15: #{tpu_custom_call.1} parent=11 // pred_region
          _
        $region16: #{tpu_custom_call.1} parent=11 // pred_fallthru
          _
        // Predicated region
        $region17: #{tpu_custom_call.1} parent=11 // pred_check
          %p171 = pneg %p85
        $region18: #{tpu_custom_call.1} parent=11 // pred_check_branch
          %173 = sbr.rel (%p171) target = $region20
        $region19: #{tpu_custom_call.1} parent=11 // pred_region
          _
        $region20: #{tpu_custom_call.1} parent=11 // pred_fallthru
          _
        // Predicated region
        $region21: #{tpu_custom_call.1} parent=11 // pred_check
          %p174 = pneg %p106
        $region22: #{tpu_custom_call.1} parent=11 // pred_check_branch
          %176 = sbr.rel (%p174) target = $region24
        $region23: #{tpu_custom_call.1} parent=11 // pred_region
          _
        $region24: #{tpu_custom_call.1} parent=11 // pred_fallthru
          _
        // Predicated region
        $region25: #{tpu_custom_call.1} parent=11 // pred_check
          %p177 = pneg %p127
        $region26: #{tpu_custom_call.1} parent=11 // pred_check_branch
          %179 = sbr.rel (%p177) target = $region28
        $region27: #{tpu_custom_call.1} parent=11 // pred_region
          _
        $region28: #{tpu_custom_call.1} parent=11 // pred_fallthru
          _
      $region12: #{tpu_custom_call.1} parent=5 // pred_fallthru
        _
      %p180 = scmp.lt.s32.totalorder %s17, 2
      // Predicated region
      $region29: #{tpu_custom_call.1} parent=5 // pred_check
        %p181 = pneg %p180
      $region30: #{tpu_custom_call.1} parent=5 // pred_check_branch
        %183 = sbr.rel (%p181) target = $region32
      $region31: #{tpu_custom_call.1} parent=5 // pred_region
        // Predicated region
        $region33: #{tpu_custom_call.1} parent=31 // pred_check
          %p184 = pneg %p37
        $region34: #{tpu_custom_call.1} parent=31 // pred_check_branch
          %186 = sbr.rel (%p184) target = $region36
        $region35: #{tpu_custom_call.1} parent=31 // pred_region
          %s187 = sand.u32 %s27, 1
          %s188 = scalar_lea.sflag [#allocation3], %s187
          %s189 = sand.u32 %s27, 1
          %s190 = smul.addr %s189, 32
          %s191 = scalar_lea.vmem [#allocation2], %s190
          %193 = vsyncadd %s188, 0
          %s194 = smul.addr %s17, 4
          %s195 = smul.addr %s194, 8
          %s196 = scalar_lea.hbm %s0, %s195
          %s197 = sshll.u32 %s196, 4
          %s198 = int_to_ptr.hbm [resolvable:$true] %s197
          %s199 = sshll.u32 %s191, 4
          %s200 = int_to_ptr.vmem [resolvable:$true] %s199
          %205 = dma.hbm_to_vmem [thread:$0]  %s198, 512, %s200, %s188, 256, 256, 16
        $region36: #{tpu_custom_call.1} parent=31 // pred_fallthru
          _
      $region32: #{tpu_custom_call.1} parent=5 // pred_fallthru
        _
      %p206 = scmp.le.s32.totalorder 1, %s17
      %p207 = scmp.lt.s32.totalorder %s17, 3
      %p208 = pnand %p206, %p207
      %p209 = pneg %p208
      // Predicated region
      $region37: #{tpu_custom_call.1} parent=5 // pred_check
        _
      $region38: #{tpu_custom_call.1} parent=5 // pred_check_branch
        %211 = sbr.rel (%p208) target = $region40
      $region39: #{tpu_custom_call.1} parent=5 // pred_region
        %s212 = ssub.s32 %s17, 1
        %s213 = sand.u32 %s30, 1
        %s214 = scalar_lea.sflag [#allocation3], %s213
        %s215 = sand.u32 %s30, 1
        %s216 = smul.addr %s215, 32
        %s217 = scalar_lea.vmem [#allocation2], %s216
        // Predicated region
        $region41: #{tpu_custom_call.1} parent=39 // pred_check
          %p218 = pneg %p43
        $region42: #{tpu_custom_call.1} parent=39 // pred_check_branch
          %220 = sbr.rel (%p218) target = $region44
        $region43: #{tpu_custom_call.1} parent=39 // pred_region
          %222 = dma.done %s214, 512
        $region44: #{tpu_custom_call.1} parent=39 // pred_fallthru
          _
        %s223 = sand.u32 %s30, 1
        %s224 = scalar_lea.sflag [#allocation3], %s223
        %s225 = sand.u32 %s30, 1
        %s226 = smul.addr %s225, 32
        %s227 = scalar_lea.vmem [#allocation2], %s226
        %p228 = pneg %p43
        %p229 = pneg %p40
        %p230 = pneg %p64
        %p231 = pneg %p61
        %p232 = pneg %p85
        %p233 = pneg %p82
        %p234 = pneg %p106
        %p235 = pneg %p103
        %p236 = pneg %p127
        %p237 = pneg %p124
        %p238 = pneg %p153
        %p239 = pneg %p150
        %s240 = sand.u32 %s140, 1
        %s241 = scalar_lea.sflag [#allocation4], %s240
        %s242 = sand.u32 %s140, 1
        %s243 = smul.addr %s242, 32
        %s244 = scalar_lea.vmem [#allocation5], %s243
        %v245 = vld [vmem:[%s217] sm:$0xff]
        %v246 = vld [vmem:[%s217 + $0x8] sm:$0xff]
        %v247 = vld [vmem:[%s217 + $0x10] sm:$0xff]
        %v248 = vld [vmem:[%s217 + $0x18] sm:$0xff]
        %v249 = vadd.f32 %v245, %v246
        %250 = vadd.xlane.f32.xlu0 %v249
        %v251 = vpop.xlane.xlu0 %250
        %v252 = vadd.f32 %v247, %v248
        %253 = vadd.xlane.f32.xlu0 %v252
        %v254 = vpop.xlane.xlu0 %253
        %v255 = vmul.f32 %v251, 0.00390625
        %v256 = vmul.f32 %v254, 0.00390625
        %v257 = vld [vmem:[%s1] sm:$0xff]
        %v258 = vld [vmem:[%s1 + $0x8] sm:$0xff]
        %v259 = vld [vmem:[%s2] sm:$0x1]
        %v260 = vld [vmem:[%s3] sm:$0xff]
        %v261 = vld [vmem:[%s3 + $0x8] sm:$0xff]
        %v262 = vld [vmem:[%s4] sm:$0x1]
        %v263 = vmul.f32 %v255, %v257
        %v264 = vmul.f32 %v256, %v258
        %vm265 = vcmask 31744
        %v266 = vsel %vm265, %v263, 0.0
        %v267 = vsel %vm265, %v264, 0.0
        %v268 = vadd.f32 %v266, %v267
        %v269 = vrot.slane %v268, 4
        %v270 = vadd.f32 %v268, %v269
        %v271 = vrot.slane %v270, 2
        %v272 = vadd.f32 %v270, %v271
        %v273 = vrot.slane %v272, 1
        %v274 = vadd.f32 %v272, %v273
        %v275 = vadd.f32 %v274, %v259
        %v276 = vmax.f32 %v275, 0.0
        %v277 = vperm.slane %v276, 0
        %v278 = vmul.f32 %v277, %v260
        %v279 = vmul.f32 %v277, %v261
        %v280 = vsel %vm265, %v278, 0.0
        %281 = vadd.xlane.f32.xlu0 %v280
        %v282 = vpop.xlane.xlu0 %281
        %v283 = vsel %vm265, %v279, 0.0
        %284 = vadd.xlane.f32.xlu0 %v283
        %v285 = vpop.xlane.xlu0 %284
        %v287 = vperm.slane %v262, 0
        %v288 = vlaneseq
        %v289 = vshrl.u32 %v288, 7
        %291 = vset.pattern.permute.xlu0 %v289
        %292 = vperm.xlu0 %291, %v287
        %v293 = vpop.permute.xlu0 %292
        %v294 = vlaneseq
        %v295 = vshrl.u32 %v294, 7
        %v296 = vadd.s32 %v295, 8
        %297 = vset.pattern.permute.xlu0 %v296
        %298 = vperm.xlu0 %297, %v287
        %v299 = vpop.permute.xlu0 %298
        %v302 = vadd.f32 %v282, %v293
        %v303 = vadd.f32 %v285, %v299
        %v304 = vadd.f32 %v302, 3.0
        %v305 = vadd.f32 %v303, 3.0
        %v306 = vmax.f32 %v304, 0.0
        %v307 = vmax.f32 %v305, 0.0
        %v308 = vmin.f32 %v306, 6.0
        %v309 = vmin.f32 %v307, 6.0
        %v310 = vmul.f32 %v308, 0.16666667
        %v311 = vmul.f32 %v309, 0.16666667
        %313 = vset.pattern.permute.xlu0 0
        %314 = vperm.xlu0 %313, %v310
        %v315 = vpop.permute.xlu0 %314
        %318 = vset.pattern.permute.xlu0 0
        %319 = vperm.xlu0 %318, %v311
        %v320 = vpop.permute.xlu0 %319
        %v322 = vmul.f32 %v245, %v315
        %v323 = vmul.f32 %v246, %v315
        %v324 = vmul.f32 %v247, %v320
        %v325 = vmul.f32 %v248, %v320
        %326 = vst [vmem:[%s244] sm:$0xff] %v322
        %327 = vst [vmem:[%s244 + $0x8] sm:$0xff] %v323
        %328 = vst [vmem:[%s244 + $0x10] sm:$0xff] %v324
        %329 = vst [vmem:[%s244 + $0x18] sm:$0xff] %v325
        %s330 = sand.u32 %s140, 1
        %s331 = scalar_lea.sflag [#allocation4], %s330
        %s332 = sand.u32 %s140, 1
        %s333 = smul.addr %s332, 32
        %s334 = scalar_lea.vmem [#allocation5], %s333
        // Predicated region
        $region45: #{tpu_custom_call.1} parent=39 // pred_check
          %p335 = pneg %p150
        $region46: #{tpu_custom_call.1} parent=39 // pred_check_branch
          %337 = sbr.rel (%p335) target = $region48
        $region47: #{tpu_custom_call.1} parent=39 // pred_region
          %339 = vsyncadd %s331, 0
          %s340 = smul.addr %s22, 4
          %s341 = smul.addr %s340, 8
          %s342 = scalar_lea.hbm %s5, %s341
          %s343 = sshll.u32 %s334, 4
          %s344 = int_to_ptr.vmem [resolvable:$true] %s343
          %s345 = sshll.u32 %s342, 4
          %s346 = int_to_ptr.hbm [resolvable:$true] %s345
          %351 = dma.vmem_to_hbm [thread:$0]  %s344, 512, %s346, %s331, 256, 256, 16
        $region48: #{tpu_custom_call.1} parent=39 // pred_fallthru
          _
      $region40: #{tpu_custom_call.1} parent=5 // pred_fallthru
        _
      %p352 = scmp.le.s32.totalorder 2, %s17
      // Predicated region
      $region49: #{tpu_custom_call.1} parent=5 // pred_check
        %p353 = pneg %p352
      $region50: #{tpu_custom_call.1} parent=5 // pred_check_branch
        %355 = sbr.rel (%p353) target = $region52
      $region51: #{tpu_custom_call.1} parent=5 // pred_region
        %s356 = ssub.s32 %s17, 2
        // Predicated region
        $region53: #{tpu_custom_call.1} parent=51 // pred_check
          %p357 = pneg %p156
        $region54: #{tpu_custom_call.1} parent=51 // pred_check_branch
          %359 = sbr.rel (%p357) target = $region56
        $region55: #{tpu_custom_call.1} parent=51 // pred_region
          %s360 = sand.u32 %s141, 1
          %s361 = scalar_lea.sflag [#allocation4], %s360
          %s362 = sand.u32 %s141, 1
          %s363 = smul.addr %s362, 32
          %s364 = scalar_lea.vmem [#allocation5], %s363
          %366 = dma.done %s361, 512
        $region56: #{tpu_custom_call.1} parent=51 // pred_fallthru
          _
      $region52: #{tpu_custom_call.1} parent=5 // pred_fallthru
        _
    $region6: #{tpu_custom_call.1} parent=1 // loop_footer
      %s21 = sadd.s32 1, %s17
    $region7: #{tpu_custom_call.1} parent=1 // loop_footer_branch
      %16 = sbr.rel target = $region3
    $region8: #{tpu_custom_call.1} parent=1 // loop_exit
      _
    %367 = vsyncpa [#allocation3], 1
    %s368 = scalar_lea.sflag [#allocation3], 1
    %369 = vsyncpa %s368, 1
    %370 = vsyncpa [#allocation4], 1
    %s371 = scalar_lea.sflag [#allocation4], 1
    %372 = vsyncpa %s371, 1

</llo_original>
